<compile_context>
chip_gen: v5e
topology: v5e:2x2
jax: 0.10.0
libtpu: 0.0.40
codegen_flags: <defaults>
</compile_context>

<pallas_src>
import math

import jax
import jax.numpy as jnp
from jax.experimental import pallas as pl
from jax.experimental.pallas import tpu as pltpu

# SELU constants (match torch.nn.SELU), pre-folded.
_SELU_ALPHA = 1.6732632423543772848170429916717
_SELU_SCALE = 1.0507009873554804934193349852946
_SELU_SCALE_ALPHA = _SELU_SCALE * _SELU_ALPHA


def _selu(x):
    # x > 0:  scale * x
    # x <= 0: scale*alpha*exp(x) - scale*alpha      (constants folded; exp -> EUP)
    return jnp.where(
        x > 0.0,
        _SELU_SCALE * x,
        _SELU_SCALE_ALPHA * jnp.exp(x) - _SELU_SCALE_ALPHA,
    )


def _mlp_kernel(x_ref, w1_ref, b1_ref, w2_ref, b2_ref, w3_ref, b3_ref, o_ref):
    x = x_ref[...].astype(jnp.float32)

    h = _selu(jnp.dot(x, w1_ref[...], preferred_element_type=jnp.float32) + b1_ref[...])
    h = _selu(jnp.dot(h, w2_ref[...], preferred_element_type=jnp.float32) + b2_ref[...])
    h = _selu(jnp.dot(h, w3_ref[...], preferred_element_type=jnp.float32) + b3_ref[...])

    o_ref[...] = h.astype(o_ref.dtype)


def _round_up(x, m):
    return (x + m - 1) // m * m


def common_activity_analysis(x, params, *, tile_b=2048):
    """x: (batchSize, numCommonFeatures) -> (batchSize, numActivityFeatures)."""
    w1, b1, w2, b2, w3, b3 = params
    batch, num_features = x.shape
    hidden = w1.shape[1]
    num_activity = w3.shape[1]
    assert num_features == w1.shape[0], (num_features, w1.shape[0])

    # Batch tile: multiple of 8 (sublane), clamped to the (padded) batch.
    tile_b = min(tile_b, _round_up(batch, 8))
    padded_batch = _round_up(batch, tile_b)
    if padded_batch != batch:
        x = jnp.pad(x, ((0, padded_batch - batch), (0, 0)))
    n_tiles = padded_batch // tile_b

    dsize = jnp.dtype(x.dtype).itemsize
    weight_bytes = sum(int(p.size) * int(jnp.dtype(p.dtype).itemsize) for p in params)
    cost = pl.CostEstimate(
        flops=2 * padded_batch
        * (num_features * hidden + hidden * num_activity + num_activity * num_activity),
        transcendentals=padded_batch * (hidden + 2 * num_activity),
        bytes_accessed=padded_batch * (num_features + num_activity) * dsize + weight_bytes,
    )

    const_map = lambda i: (0, 0)
    out = pl.pallas_call(
        _mlp_kernel,
        out_shape=jax.ShapeDtypeStruct((padded_batch, num_activity), x.dtype),
        grid=(n_tiles,),
        in_specs=[
            # x: streamed per batch tile (double-buffered by the pipeline).
            pl.BlockSpec((tile_b, num_features), lambda i: (i, 0)),
            # Weights / biases: constant block index -> fetched once, VMEM-resident.
            pl.BlockSpec(w1.shape, const_map),
            pl.BlockSpec(b1.shape, const_map),
            pl.BlockSpec(w2.shape, const_map),
            pl.BlockSpec(b2.shape, const_map),
            pl.BlockSpec(w3.shape, const_map),
            pl.BlockSpec(b3.shape, const_map),
        ],
        out_specs=pl.BlockSpec((tile_b, num_activity), lambda i: (i, 0)),
        compiler_params=pltpu.CompilerParams(dimension_semantics=("parallel",)),
        cost_estimate=cost,
    )(x, w1, b1, w2, b2, w3, b3)

    return out[:batch] if padded_batch != batch else out


def init_params(key, num_common_features, num_activity_features, hidden=32):
    """Deterministic PyTorch-Linear-style init: U(-1/sqrt(fan_in), 1/sqrt(fan_in))."""
    dims = [
        (num_common_features, hidden),
        (hidden, num_activity_features),
        (num_activity_features, num_activity_features),
    ]
    params = []
    for fan_in, fan_out in dims:
        key, kw, kb = jax.random.split(key, 3)
        bound = 1.0 / math.sqrt(fan_in)
        w = jax.random.uniform(kw, (fan_in, fan_out), jnp.float32, -bound, bound)
        b = jax.random.uniform(kb, (1, fan_out), jnp.float32, -bound, bound)
        params.extend([w, b])
    return tuple(params)


def _reference(x, params):
    w1, b1, w2, b2, w3, b3 = params
    h = _selu(x @ w1 + b1)
    h = _selu(h @ w2 + b2)
    h = _selu(h @ w3 + b3)
    return h


if __name__ == "__main__":
    num_common_features = 16
    num_activity_features = 8
    batch = 8

    key = jax.random.PRNGKey(0)
    key, kx = jax.random.split(key)
    x = jax.random.normal(kx, (batch, num_common_features), jnp.float32)
    params = init_params(key, num_common_features, num_activity_features)

    out = common_activity_analysis(x, params)
    jax.block_until_ready(out)

    ref = _reference(x, params)
    assert out.shape == (batch, num_activity_features), out.shape
    assert jnp.allclose(out, ref, atol=1e-5, rtol=1e-5), (out, ref)

    # Also exercise a batch that is not a multiple of the tile (padding path).
    key, kx2 = jax.random.split(key)
    x2 = jax.random.normal(kx2, (37, num_common_features), jnp.float32)
    out2 = common_activity_analysis(x2, params, tile_b=16)
    jax.block_until_ready(out2)
    assert out2.shape == (37, num_activity_features), out2.shape
    assert jnp.allclose(out2, _reference(x2, params), atol=1e-5, rtol=1e-5)

    print("KERNEL_OK")
</pallas_src>

<mosaic_0001>
module attributes {stable_mosaic.version = 11 : i64} {
  func.func @_mlp_kernel(%arg0: i32, %arg1: memref<8x16xf32, #tpu.memory_space<vmem>>, %arg2: memref<16x32xf32, #tpu.memory_space<vmem>>, %arg3: memref<1x32xf32, #tpu.memory_space<vmem>>, %arg4: memref<32x8xf32, #tpu.memory_space<vmem>>, %arg5: memref<1x8xf32, #tpu.memory_space<vmem>>, %arg6: memref<8x8xf32, #tpu.memory_space<vmem>>, %arg7: memref<1x8xf32, #tpu.memory_space<vmem>>, %arg8: memref<8x8xf32, #tpu.memory_space<vmem>>) attributes {dimension_semantics = [#tpu.dimension_semantics<parallel>], iteration_bounds = array<i64: 1>, scalar_prefetch = 0 : i64, scratch_operands = 0 : i64, tpu.core_type = #tpu.core_type<tc>, window_params = [{transform_indices = @transform_0, window_bounds = array<i64: 8, 16>}, {pipeline_mode = #tpu.pipeline_mode<synchronous>, transform_indices = @transform_1, window_bounds = array<i64: 16, 32>}, {pipeline_mode = #tpu.pipeline_mode<synchronous>, transform_indices = @transform_2, window_bounds = array<i64: 1, 32>}, {pipeline_mode = #tpu.pipeline_mode<synchronous>, transform_indices = @transform_3, window_bounds = array<i64: 32, 8>}, {pipeline_mode = #tpu.pipeline_mode<synchronous>, transform_indices = @transform_4, window_bounds = array<i64: 1, 8>}, {pipeline_mode = #tpu.pipeline_mode<synchronous>, transform_indices = @transform_5, window_bounds = array<i64: 8, 8>}, {pipeline_mode = #tpu.pipeline_mode<synchronous>, transform_indices = @transform_6, window_bounds = array<i64: 1, 8>}, {transform_indices = @transform_7, window_bounds = array<i64: 8, 8>}]} {
    %c0 = arith.constant 0 : index
    %c0_0 = arith.constant 0 : index
    %0 = vector.load %arg1[%c0, %c0_0] : memref<8x16xf32, #tpu.memory_space<vmem>>, vector<8x16xf32>
    %c0_1 = arith.constant 0 : index
    %c0_2 = arith.constant 0 : index
    %1 = vector.load %arg2[%c0_1, %c0_2] : memref<16x32xf32, #tpu.memory_space<vmem>>, vector<16x32xf32>
    %cst = arith.constant dense<0.000000e+00> : vector<8x32xf32>
    %2 = tpu.matmul %0, %1, %cst {dimension_numbers = #tpu.dot_dimension_numbers<[1], [0], [0], [1], [0, 0, 1, 1], [], []>} : vector<8x16xf32>, vector<16x32xf32>, vector<8x32xf32> -> vector<8x32xf32>
    %c0_3 = arith.constant 0 : index
    %c0_4 = arith.constant 0 : index
    %3 = vector.load %arg3[%c0_3, %c0_4] : memref<1x32xf32, #tpu.memory_space<vmem>>, vector<1x32xf32>
    %4 = vector.broadcast %3 : vector<1x32xf32> to vector<8x32xf32>
    %5 = arith.addf %2, %4 : vector<8x32xf32>
    %cst_5 = arith.constant 0.000000e+00 : f32
    %6 = vector.broadcast %cst_5 : f32 to vector<8x32xf32>
    %7 = arith.cmpf ogt, %5, %6 : vector<8x32xf32>
    %cst_6 = arith.constant 1.05070102 : f32
    %8 = vector.broadcast %cst_6 : f32 to vector<8x32xf32>
    %9 = arith.mulf %8, %5 : vector<8x32xf32>
    %10 = math.exp %5 : vector<8x32xf32>
    %cst_7 = arith.constant 1.75809932 : f32
    %11 = vector.broadcast %cst_7 : f32 to vector<8x32xf32>
    %12 = arith.mulf %11, %10 : vector<8x32xf32>
    %cst_8 = arith.constant 1.75809932 : f32
    %13 = vector.broadcast %cst_8 : f32 to vector<8x32xf32>
    %14 = arith.subf %12, %13 : vector<8x32xf32>
    %15 = arith.select %7, %9, %14 : vector<8x32xi1>, vector<8x32xf32>
    %c0_9 = arith.constant 0 : index
    %c0_10 = arith.constant 0 : index
    %16 = vector.load %arg4[%c0_9, %c0_10] : memref<32x8xf32, #tpu.memory_space<vmem>>, vector<32x8xf32>
    %cst_11 = arith.constant dense<0.000000e+00> : vector<8x8xf32>
    %17 = tpu.matmul %15, %16, %cst_11 {dimension_numbers = #tpu.dot_dimension_numbers<[1], [0], [0], [1], [0, 0, 1, 1], [], []>} : vector<8x32xf32>, vector<32x8xf32>, vector<8x8xf32> -> vector<8x8xf32>
    %c0_12 = arith.constant 0 : index
    %c0_13 = arith.constant 0 : index
    %18 = vector.load %arg5[%c0_12, %c0_13] : memref<1x8xf32, #tpu.memory_space<vmem>>, vector<1x8xf32>
    %19 = vector.broadcast %18 : vector<1x8xf32> to vector<8x8xf32>
    %20 = arith.addf %17, %19 : vector<8x8xf32>
    %cst_14 = arith.constant 0.000000e+00 : f32
    %21 = vector.broadcast %cst_14 : f32 to vector<8x8xf32>
    %22 = arith.cmpf ogt, %20, %21 : vector<8x8xf32>
    %cst_15 = arith.constant 1.05070102 : f32
    %23 = vector.broadcast %cst_15 : f32 to vector<8x8xf32>
    %24 = arith.mulf %23, %20 : vector<8x8xf32>
    %25 = math.exp %20 : vector<8x8xf32>
    %cst_16 = arith.constant 1.75809932 : f32
    %26 = vector.broadcast %cst_16 : f32 to vector<8x8xf32>
    %27 = arith.mulf %26, %25 : vector<8x8xf32>
    %cst_17 = arith.constant 1.75809932 : f32
    %28 = vector.broadcast %cst_17 : f32 to vector<8x8xf32>
    %29 = arith.subf %27, %28 : vector<8x8xf32>
    %30 = arith.select %22, %24, %29 : vector<8x8xi1>, vector<8x8xf32>
    %c0_18 = arith.constant 0 : index
    %c0_19 = arith.constant 0 : index
    %31 = vector.load %arg6[%c0_18, %c0_19] : memref<8x8xf32, #tpu.memory_space<vmem>>, vector<8x8xf32>
    %cst_20 = arith.constant dense<0.000000e+00> : vector<8x8xf32>
    %32 = tpu.matmul %30, %31, %cst_20 {dimension_numbers = #tpu.dot_dimension_numbers<[1], [0], [0], [1], [0, 0, 1, 1], [], []>} : vector<8x8xf32>, vector<8x8xf32>, vector<8x8xf32> -> vector<8x8xf32>
    %c0_21 = arith.constant 0 : index
    %c0_22 = arith.constant 0 : index
    %33 = vector.load %arg7[%c0_21, %c0_22] : memref<1x8xf32, #tpu.memory_space<vmem>>, vector<1x8xf32>
    %34 = vector.broadcast %33 : vector<1x8xf32> to vector<8x8xf32>
    %35 = arith.addf %32, %34 : vector<8x8xf32>
    %cst_23 = arith.constant 0.000000e+00 : f32
    %36 = vector.broadcast %cst_23 : f32 to vector<8x8xf32>
    %37 = arith.cmpf ogt, %35, %36 : vector<8x8xf32>
    %cst_24 = arith.constant 1.05070102 : f32
    %38 = vector.broadcast %cst_24 : f32 to vector<8x8xf32>
    %39 = arith.mulf %38, %35 : vector<8x8xf32>
    %40 = math.exp %35 : vector<8x8xf32>
    %cst_25 = arith.constant 1.75809932 : f32
    %41 = vector.broadcast %cst_25 : f32 to vector<8x8xf32>
    %42 = arith.mulf %41, %40 : vector<8x8xf32>
    %cst_26 = arith.constant 1.75809932 : f32
    %43 = vector.broadcast %cst_26 : f32 to vector<8x8xf32>
    %44 = arith.subf %42, %43 : vector<8x8xf32>
    %45 = arith.select %37, %39, %44 : vector<8x8xi1>, vector<8x8xf32>
    %c0_27 = arith.constant 0 : index
    %c0_28 = arith.constant 0 : index
    %46 = vector.load %arg8[%c0_27, %c0_28] : memref<8x8xf32, #tpu.memory_space<vmem>>, vector<8x8xf32>
    tpu.vector_store %arg8[%c0_27, %c0_28], %45 {strides = array<i32>} : memref<8x8xf32, #tpu.memory_space<vmem>>, vector<8x8xf32>,
    return
  }
  func.func @transform_0(%arg0: i32) -> (i32, i32) {
    %c0_i32 = arith.constant 0 : i32
    %c0_i32_0 = arith.constant 0 : i32
    return %arg0, %c0_i32 : i32, i32
  }
  func.func @transform_1(%arg0: i32) -> (i32, i32) {
    %c0_i32 = arith.constant 0 : i32
    %c0_i32_0 = arith.constant 0 : i32
    %c0_i32_1 = arith.constant 0 : i32
    return %c0_i32, %c0_i32_0 : i32, i32
  }
  func.func @transform_2(%arg0: i32) -> (i32, i32) {
    %c0_i32 = arith.constant 0 : i32
    %c0_i32_0 = arith.constant 0 : i32
    %c0_i32_1 = arith.constant 0 : i32
    return %c0_i32, %c0_i32_0 : i32, i32
  }
  func.func @transform_3(%arg0: i32) -> (i32, i32) {
    %c0_i32 = arith.constant 0 : i32
    %c0_i32_0 = arith.constant 0 : i32
    %c0_i32_1 = arith.constant 0 : i32
    return %c0_i32, %c0_i32_0 : i32, i32
  }
  func.func @transform_4(%arg0: i32) -> (i32, i32) {
    %c0_i32 = arith.constant 0 : i32
    %c0_i32_0 = arith.constant 0 : i32
    %c0_i32_1 = arith.constant 0 : i32
    return %c0_i32, %c0_i32_0 : i32, i32
  }
  func.func @transform_5(%arg0: i32) -> (i32, i32) {
    %c0_i32 = arith.constant 0 : i32
    %c0_i32_0 = arith.constant 0 : i32
    %c0_i32_1 = arith.constant 0 : i32
    return %c0_i32, %c0_i32_0 : i32, i32
  }
  func.func @transform_6(%arg0: i32) -> (i32, i32) {
    %c0_i32 = arith.constant 0 : i32
    %c0_i32_0 = arith.constant 0 : i32
    %c0_i32_1 = arith.constant 0 : i32
    return %c0_i32, %c0_i32_0 : i32, i32
  }
  func.func @transform_7(%arg0: i32) -> (i32, i32) {
    %c0_i32 = arith.constant 0 : i32
    %c0_i32_0 = arith.constant 0 : i32
    return %arg0, %c0_i32 : i32, i32
  }
}

</mosaic_0001>

<llo_original>
// kernel: tpu_custom_call.1
$region0: #{tpu_custom_call.1}
  #allocation0 [shape = 'u32[]', space=smem, size = 0x4, offset = 0x4, fixed_abs, tag = 'smem constant byte address 0x4 - core index']
  #allocation1 [shape = 'u32[72,128]{1,0:T(1,128)}', space=vmem, size = 0x9000, scoped, tag = 'internal scratch']
  %s0 = inlined_call_operand.vmem [shape: f32[8,16], index: 0, kind: input, shape index: {}]
  %s1 = inlined_call_operand.vmem [shape: f32[16,32], index: 1, kind: input, shape index: {}]
  %s2 = inlined_call_operand.vmem [shape: f32[1,32], index: 2, kind: input, shape index: {}]
  %s3 = inlined_call_operand.vmem [shape: f32[32,8], index: 3, kind: input, shape index: {}]
  %s4 = inlined_call_operand.vmem [shape: f32[1,8], index: 4, kind: input, shape index: {}]
  %s5 = inlined_call_operand.vmem [shape: f32[8,8], index: 5, kind: input, shape index: {}]
  %s6 = inlined_call_operand.vmem [shape: f32[1,8], index: 6, kind: input, shape index: {}]
  %s7 = inlined_call_operand.hbm [shape: f32[8,8], index: 7, kind: output, shape index: {}]
  %s8 = sld [smem:[#allocation0]]
  $region38: #{tpu_custom_call.1} parent=0
    _
  %s10 = ssub.s32 1, %s8
  %s11 = scalar_select 0, %s10, %s8
  $region1: #{tpu_custom_call.1} parent=0
    #allocation2 [shape = 'u8[4096]{0}', space=vmem, size = 0x1000, scoped, tag = 'output window, operand 0, single buffered']
    #allocation3 [shape = 's32[1]{0}', space=sflag, size = 0x4, scoped, tag = 'scoped memory for tpu_custom_call.1']
    %12 = vsyncpa [#allocation3], 0
    // Predicated region
    $region2: #{tpu_custom_call.1} parent=1 // pred_check
      _
    $region3: #{tpu_custom_call.1} parent=1 // pred_check_branch
      %14 = sbr.rel (0) target = $region5
    $region4: #{tpu_custom_call.1} parent=1 // pred_region
      _
    $region5: #{tpu_custom_call.1} parent=1 // pred_fallthru
      _
    // Predicated region
    $region6: #{tpu_custom_call.1} parent=1 // pred_check
      _
    $region7: #{tpu_custom_call.1} parent=1 // pred_check_branch
      %16 = sbr.rel (0) target = $region9
    $region8: #{tpu_custom_call.1} parent=1 // pred_region
      _
    $region9: #{tpu_custom_call.1} parent=1 // pred_fallthru
      _
    // Predicated region
    $region10: #{tpu_custom_call.1} parent=1 // pred_check
      _
    $region11: #{tpu_custom_call.1} parent=1 // pred_check_branch
      %18 = sbr.rel (0) target = $region13
    $region12: #{tpu_custom_call.1} parent=1 // pred_region
      _
    $region13: #{tpu_custom_call.1} parent=1 // pred_fallthru
      _
    // Predicated region
    $region14: #{tpu_custom_call.1} parent=1 // pred_check
      _
    $region15: #{tpu_custom_call.1} parent=1 // pred_check_branch
      %20 = sbr.rel (0) target = $region17
    $region16: #{tpu_custom_call.1} parent=1 // pred_region
      _
    $region17: #{tpu_custom_call.1} parent=1 // pred_fallthru
      _
    // Predicated region
    $region18: #{tpu_custom_call.1} parent=1 // pred_check
      _
    $region19: #{tpu_custom_call.1} parent=1 // pred_check_branch
      %22 = sbr.rel (0) target = $region21
    $region20: #{tpu_custom_call.1} parent=1 // pred_region
      _
    $region21: #{tpu_custom_call.1} parent=1 // pred_fallthru
      _
    // Predicated region
    $region22: #{tpu_custom_call.1} parent=1 // pred_check
      _
    $region23: #{tpu_custom_call.1} parent=1 // pred_check_branch
      %24 = sbr.rel (0) target = $region25
    $region24: #{tpu_custom_call.1} parent=1 // pred_region
      _
    $region25: #{tpu_custom_call.1} parent=1 // pred_fallthru
      _
    // Predicated region
    $region26: #{tpu_custom_call.1} parent=1 // pred_check
      _
    $region27: #{tpu_custom_call.1} parent=1 // pred_check_branch
      %26 = sbr.rel (0) target = $region29
    $region28: #{tpu_custom_call.1} parent=1 // pred_region
      _
    $region29: #{tpu_custom_call.1} parent=1 // pred_fallthru
      _
    %v27 = vld [vmem:[%s0] sm:$0xff]
    %v28 = vld [vmem:[%s1] sm:$0xff]
    %v29 = vld [vmem:[%s1 + $0x8] sm:$0xff]
    %v30 = vld [vmem:[%s2] sm:$0x1]
    %v32 = vperm.slane %v30, 0
    %vm34 = vcmask 130048
    %v36 = vsel %vm34, %v27, 0
    %38 = vmatpush.msra.mxu0 0.0
    %39 = vmatpush.msra.mxu0 0.0
    %40 = vmatpush.msra.mxu0 0.0
    %41 = vmatpush.msra.mxu0 0.0
    %42 = vmatpush.msra.mxu0 0.0
    %43 = vmatpush.msra.mxu0 0.0
    %44 = vmatpush.msra.mxu0 0.0
    %45 = vmatpush.msra.mxu0 0.0
    %46 = vmatpush.msra.mxu0 0.0
    %47 = vmatpush.msra.mxu0 0.0
    %48 = vmatpush.msra.mxu0 0.0
    %49 = vmatpush.msra.mxu0 0.0
    %50 = vmatpush.msra.mxu0 0.0
    %51 = vmatpush.msra.mxu0 0.0
    %52 = vmatpush.msra.mxu0 %v29
    %53 = vmatpush.msra.mxu0 %v28
    %54 = vmatmul.f32.gmra.mxu0 %v36
    %v55 = vpop.f32.mrf.mxu0
    %v56 = vadd.f32 %v32, %v55
    %57 = vdwg.mxu0
    %vm58 = vcmp.gt.f32.partialorder %v56, 0.0
    %v59 = vmul.f32 %v56, 1.050701
    %v60 = vmul.f32 %v56, 1.442695
    %v61 = vpow.pop %v60
    %v62 = vmul.f32 %v61, 1.7580993
    %v63 = vsub.f32 %v62, 1.7580993
    %v64 = vsel %vm58, %v59, %v63
    %v65 = vld [vmem:[%s3] sm:$0xff]
    %v66 = vld [vmem:[%s3 + $0x8] sm:$0xff]
    %v67 = vld [vmem:[%s3 + $0x10] sm:$0xff]
    %v68 = vld [vmem:[%s3 + $0x18] sm:$0xff]
    %v69 = vld [vmem:[%s4] sm:$0x1]
    %v71 = vperm.slane %v69, 0
    %vm73 = vcmask 261120
    %v75 = vsel %vm73, %v64, 0
    %77 = vmatpush.msra.mxu0 0.0
    %78 = vmatpush.msra.mxu0 0.0
    %79 = vmatpush.msra.mxu0 0.0
    %80 = vmatpush.msra.mxu0 0.0
    %81 = vmatpush.msra.mxu0 0.0
    %82 = vmatpush.msra.mxu0 0.0
    %83 = vmatpush.msra.mxu0 0.0
    %84 = vmatpush.msra.mxu0 0.0
    %85 = vmatpush.msra.mxu0 0.0
    %86 = vmatpush.msra.mxu0 0.0
    %87 = vmatpush.msra.mxu0 0.0
    %88 = vmatpush.msra.mxu0 0.0
    %89 = vmatpush.msra.mxu0 %v68
    %90 = vmatpush.msra.mxu0 %v67
    %91 = vmatpush.msra.mxu0 %v66
    %92 = vmatpush.msra.mxu0 %v65
    %93 = vmatmul.f32.gmra.mxu0 %v75
    %v94 = vpop.f32.mrf.mxu0
    %v95 = vadd.f32 %v71, %v94
    %96 = vdwg.mxu0
    %vm97 = vcmp.gt.f32.partialorder %v95, 0.0
    %v98 = vmul.f32 %v95, 1.050701
    %v99 = vmul.f32 %v95, 1.442695
    %v100 = vpow.pop %v99
    %v101 = vmul.f32 %v100, 1.7580993
    %v102 = vsub.f32 %v101, 1.7580993
    %v103 = vsel %vm97, %v98, %v102
    %v104 = vld [vmem:[%s5] sm:$0xff]
    %v105 = vld [vmem:[%s6] sm:$0x1]
    %v107 = vperm.slane %v105, 0
    %vm109 = vcmask 64512
    %v111 = vsel %vm109, %v103, 0
    %113 = vmatpush.msra.mxu0 0.0
    %114 = vmatpush.msra.mxu0 0.0
    %115 = vmatpush.msra.mxu0 0.0
    %116 = vmatpush.msra.mxu0 0.0
    %117 = vmatpush.msra.mxu0 0.0
    %118 = vmatpush.msra.mxu0 0.0
    %119 = vmatpush.msra.mxu0 0.0
    %120 = vmatpush.msra.mxu0 0.0
    %121 = vmatpush.msra.mxu0 0.0
    %122 = vmatpush.msra.mxu0 0.0
    %123 = vmatpush.msra.mxu0 0.0
    %124 = vmatpush.msra.mxu0 0.0
    %125 = vmatpush.msra.mxu0 0.0
    %126 = vmatpush.msra.mxu0 0.0
    %127 = vmatpush.msra.mxu0 0.0
    %128 = vmatpush.msra.mxu0 %v104
    %129 = vmatmul.f32.gmra.mxu0 %v111
    %v130 = vpop.f32.mrf.mxu0
    %v131 = vadd.f32 %v107, %v130
    %132 = vdwg.mxu0
    %vm133 = vcmp.gt.f32.partialorder %v131, 0.0
    %v134 = vmul.f32 %v131, 1.050701
    %v135 = vmul.f32 %v131, 1.442695
    %v136 = vpow.pop %v135
    %v137 = vmul.f32 %v136, 1.7580993
    %v138 = vsub.f32 %v137, 1.7580993
    %v139 = vsel %vm133, %v134, %v138
    %140 = vst.msk [vmem:[#allocation2] sm:$0xff] %vm109, %v139
    // Predicated region
    $region30: #{tpu_custom_call.1} parent=1 // pred_check
      _
    $region31: #{tpu_custom_call.1} parent=1 // pred_check_branch
      %142 = sbr.rel (0) target = $region33
    $region32: #{tpu_custom_call.1} parent=1 // pred_region
      %144 = vsyncadd [#allocation3], 0
      %s146 = sshll.u32 [#allocation2], 4
      %s147 = int_to_ptr.vmem [resolvable:$true] %s146
      %s148 = sshll.u32 %s7, 4
      %s149 = int_to_ptr.hbm [resolvable:$true] %s148
      %151 = dma.vmem_to_hbm [thread:$0]  %s147, 128, %s149, [#allocation3]
    $region33: #{tpu_custom_call.1} parent=1 // pred_fallthru
      _
    // Predicated region
    $region34: #{tpu_custom_call.1} parent=1 // pred_check
      _
    $region35: #{tpu_custom_call.1} parent=1 // pred_check_branch
      %153 = sbr.rel (0) target = $region37
    $region36: #{tpu_custom_call.1} parent=1 // pred_region
      %155 = dma.done [#allocation3], 128
    $region37: #{tpu_custom_call.1} parent=1 // pred_fallthru
      _
    %156 = vsyncpa [#allocation3], 1

</llo_original>
